<compile_context>
chip_gen: v7x
topology: tpu7x:2x2x1
jax: 0.10.0
libtpu: 0.0.40
codegen_flags: <defaults>
</compile_context>

<pallas_src>
import jax
import jax.numpy as jnp
from jax import lax
from jax.experimental import pallas as pl
from jax.experimental.pallas import tpu as pltpu


def _round_up(x, m):
    return (x + m - 1) // m * m


def _cdiv(a, b):
    return -(-a // b)


# --------------------------------------------------------------------------
# Kernels
# --------------------------------------------------------------------------
def _attn_body(h_ref, e_ref, w_ref, o_ref, mask):
    """mask: None, or a bool array broadcastable to (tq, S); True = masked."""
    h = h_ref[0]          # (tq, H)   operand dtype (f32 or bf16)
    e = e_ref[0]          # (S,  H)
    w = w_ref[...]        # (H_in, H_out)  pre-transposed in the wrapper

    # linear_in (bias=False): plain (M,K)x(K,N) on the MXU, f32 accumulation.
    hq = jnp.dot(h, w, preferred_element_type=jnp.float32)
    hq = hq.astype(h.dtype)  # back to operand dtype for the second MXU pass

    # bmm(hidden, encoder_outputs.transpose(1, 2)): contract last dims of
    # both operands (same q@k^T contraction flash-attention uses).
    dn = (((1,), (1,)), ((), ()))
    scores = lax.dot_general(hq, e, dn, preferred_element_type=jnp.float32)  # (tq, S)

    if mask is not None:
        scores = jnp.where(mask, jnp.float32(-1e9), scores)

    # softmax(dim=-1), math in f32.
    m = jnp.max(scores, axis=-1, keepdims=True)
    p = jnp.exp(scores - m)
    denom = jnp.sum(p, axis=-1, keepdims=True)
    # approx reciprocal (EUP slot): ~1e-4 relative error on the row sums.
    o_ref[0] = (p * pl.reciprocal(denom, approx=True)).astype(o_ref.dtype)


def _attn_kernel_nomask(h_ref, e_ref, w_ref, o_ref):
    _attn_body(h_ref, e_ref, w_ref, o_ref, None)


def _attn_kernel_masked(h_ref, e_ref, w_ref, m_ref, o_ref):
    _attn_body(h_ref, e_ref, w_ref, o_ref, m_ref[0] != 0)


# --------------------------------------------------------------------------
# Wrapper
# --------------------------------------------------------------------------
def _resident_spec(shape, index_map, single_buffer):
    """BlockSpec for a block that is constant along (part of) the grid.

    With single_buffer=True, request 1-deep buffering (halves its VMEM
    footprint); silently fall back if this jax version has no pipeline_mode.
    """
    if single_buffer:
        try:
            return pl.BlockSpec(shape, index_map, pipeline_mode=pl.Buffered(1))
        except Exception:
            pass
    return pl.BlockSpec(shape, index_map)


def _vmem_limit_bytes(tq, S, H, in_itemsize, out_itemsize, mask_bytes):
    """Generous scoped-VMEM budget from the chosen tiles, capped per-chip."""
    tq_r = _round_up(max(tq, 8), 8)
    s_r = _round_up(S, 128)
    h_r = _round_up(H, 128)
    est = (2 * tq_r * h_r * in_itemsize        # hidden blocks (double buffered)
           + 2 * s_r * h_r * in_itemsize       # encoder block(s)
           + 2 * h_r * h_r * in_itemsize       # weight block(s)
           + 2 * tq_r * s_r * out_itemsize     # output blocks
           + mask_bytes
           + (tq_r * h_r + 2 * tq_r * s_r) * 4  # f32 hq / scores / p
           + (4 << 20))                         # slack for internal scratch
    try:
        cap = int(pltpu.get_tpu_info().vmem_capacity_bytes) * 3 // 4
    except Exception:
        cap = 48 << 20  # safe under v7x's 64 MiB per-core VMEM
    return int(min(cap, max(32 << 20, est)))


def global_attention_luong(hidden, encoder_outputs, linear_in_weight,
                           padding_mask=None, *, out_dtype=None, tq_max=256):
    """hidden: (B, T, H); encoder_outputs: (B, S, H);
       linear_in_weight: (H, H) PyTorch nn.Linear weight (y = x @ W^T);
       padding_mask: None, a source mask of shape (S,)/(B,S)/(B,1,S), or a
       full (B, T, S) mask (slower fallback). True/nonzero = masked.
       Returns attention probabilities of shape (B, T, S)."""
    B, T, H = hidden.shape
    S = encoder_outputs.shape[1]
    out_dtype = hidden.dtype if out_dtype is None else jnp.dtype(out_dtype)

    h = hidden
    e = encoder_outputs.astype(h.dtype)
    # nn.Linear stores W as (out, in); transpose once so the in-kernel
    # projection is a plain (M,K)x(K,N) matmul (no Mosaic-inserted transpose).
    w = jnp.transpose(linear_in_weight).astype(h.dtype)

    # Balanced T tiling, rounded to the dtype's sublane pack.
    in_itemsize = jnp.dtype(h.dtype).itemsize
    sublane = {4: 8, 2: 16, 1: 32}.get(in_itemsize, 8)
    n_t = _cdiv(T, max(int(tq_max), 1))
    if n_t <= 1:
        tq = T                              # single full-T block, no padding
        n_t = 1
    else:
        tq = _round_up(_cdiv(T, n_t), sublane)
        n_t = _cdiv(T, tq)                  # last block may be partial
    grid = (B, n_t)

    # Padding-mask preprocessing (kept outside the retry closure).
    mask_op = None
    mask_is_source = False
    mask_bytes = 0
    if padding_mask is None:
        kernel = _attn_kernel_nomask
    else:
        kernel = _attn_kernel_masked
        pm = jnp.asarray(padding_mask)
        if pm.ndim == 1:
            pm = pm[None, None, :]
        elif pm.ndim == 2:
            pm = pm[:, None, :]
        if pm.shape[0] != B:
            pm = jnp.broadcast_to(pm, (B,) + pm.shape[1:])
        if pm.shape[1] == 1:
            # Fast path: source-side mask, one tiny (1,1,S) block per batch
            # element, VMEM-resident across the whole T axis.
            mask_is_source = True
            mask_op = pm.astype(jnp.int32)                       # (B, 1, S)
            mask_bytes = 2 * 8 * _round_up(S, 128) * 4
        else:
            # Dense fallback: per-target-row masks, streamed as int8 tiles.
            mask_op = jnp.broadcast_to(pm, (B, T, S)).astype(jnp.int8)
            mask_bytes = 2 * _round_up(max(tq, 32), 32) * _round_up(S, 128)

    vmem_limit = _vmem_limit_bytes(tq, S, H, in_itemsize,
                                   jnp.dtype(out_dtype).itemsize, mask_bytes)

    def _run(single_buffer):
        in_specs = [
            pl.BlockSpec((1, tq, H), lambda b, t: (b, t, 0)),                 # hidden tile
            _resident_spec((1, S, H), lambda b, t: (b, 0, 0), single_buffer),  # encoder
            _resident_spec((H, H), lambda b, t: (0, 0), single_buffer),        # weight
        ]
        operands = [h, e, w]
        if mask_op is not None:
            if mask_is_source:
                in_specs.append(
                    _resident_spec((1, 1, S), lambda b, t: (b, 0, 0), single_buffer))
            else:
                in_specs.append(pl.BlockSpec((1, tq, S), lambda b, t: (b, t, 0)))
            operands.append(mask_op)
        out_specs = pl.BlockSpec((1, tq, S), lambda b, t: (b, t, 0))

        return pl.pallas_call(
            kernel,
            out_shape=jax.ShapeDtypeStruct((B, T, S), out_dtype),
            grid_spec=pltpu.PrefetchScalarGridSpec(
                num_scalar_prefetch=0,
                grid=grid,
                in_specs=in_specs,
                out_specs=out_specs,
            ),
            compiler_params=pltpu.CompilerParams(
                dimension_semantics=("parallel", "parallel"),
                vmem_limit_bytes=vmem_limit),
        )(*operands)

    try:
        return _run(single_buffer=True)
    except Exception:
        # pl.Buffered(1) unsupported on this jax/Mosaic version: fall back to
        # default double buffering (costs VMEM headroom, not correctness).
        return _run(single_buffer=False)


# --------------------------------------------------------------------------
# Pure-JAX reference & self-test
# --------------------------------------------------------------------------
def _reference(hidden, encoder_outputs, weight, padding_mask_bs):
    hq = jnp.einsum('bti,oi->bto', hidden.astype(jnp.float32),
                    weight.astype(jnp.float32))
    sc = jnp.einsum('bto,bso->bts', hq, encoder_outputs.astype(jnp.float32))
    if padding_mask_bs is not None:
        sc = jnp.where(padding_mask_bs[:, None, :], -1e9, sc)
    return jax.nn.softmax(sc, axis=-1)


if __name__ == "__main__":
    # Small deterministic example: batch=2, tgt_len=8, src_len=8, hidden=32
    B, T, S, H = 2, 8, 8, 32
    key = jax.random.PRNGKey(0)
    k1, k2, k3 = jax.random.split(key, 3)

    hidden = jax.random.normal(k1, (B, T, H), dtype=jnp.float32)
    encoder_outputs = jax.random.normal(k2, (B, S, H), dtype=jnp.float32)
    # Deterministic init of the linear_in weight (shape (H, H), bias=False).
    linear_in_weight = (jax.random.uniform(k3, (H, H), dtype=jnp.float32)
                        - 0.5) * (2.0 / jnp.sqrt(H))
    # Source-side padding mask: mask the last 2 source positions of batch 1.
    padding_mask = jnp.zeros((B, S), dtype=bool).at[1, S - 2:].set(True)

    # f32 path, masked.
    out = global_attention_luong(hidden, encoder_outputs, linear_in_weight,
                                 padding_mask)
    jax.block_until_ready(out)
    ref = _reference(hidden, encoder_outputs, linear_in_weight, padding_mask)
    assert jnp.allclose(out.astype(jnp.float32), ref, atol=5e-3, rtol=5e-3), \
        "mismatch vs reference (f32, masked)"

    # f32 path, no mask.
    out_nm = global_attention_luong(hidden, encoder_outputs, linear_in_weight)
    ref_nm = _reference(hidden, encoder_outputs, linear_in_weight, None)
    assert jnp.allclose(out_nm.astype(jnp.float32), ref_nm,
                        atol=5e-3, rtol=5e-3), "mismatch vs reference (no mask)"

    # Multi-tile T with a partial last block (T=20, tq=8): exercises the
    # no-pad path where out-of-bounds output rows are discarded on write.
    T2 = 20
    hidden2 = jax.random.normal(k1, (B, T2, H), dtype=jnp.float32)
    out2 = global_attention_luong(hidden2, encoder_outputs, linear_in_weight,
                                  padding_mask, tq_max=8)
    ref2 = _reference(hidden2, encoder_outputs, linear_in_weight, padding_mask)
    assert jnp.allclose(out2.astype(jnp.float32), ref2,
                        atol=5e-3, rtol=5e-3), "mismatch vs reference (tiled T)"

    # bf16 operands + bf16 probabilities path (halved DMA / native MXU rate).
    out_bf = global_attention_luong(hidden.astype(jnp.bfloat16),
                                    encoder_outputs.astype(jnp.bfloat16),
                                    linear_in_weight.astype(jnp.bfloat16),
                                    padding_mask)
    jax.block_until_ready(out_bf)
    assert jnp.allclose(out_bf.astype(jnp.float32), ref,
                        atol=5e-2, rtol=5e-2), "mismatch vs reference (bf16)"

    print("KERNEL_OK")
</pallas_src>

<mosaic_0001>
module attributes {stable_mosaic.version = 11 : i64} {
  func.func @_attn_kernel_masked(%arg0: i32, %arg1: i32, %arg2: memref<1x8x32xf32, #tpu.memory_space<vmem>>, %arg3: memref<1x8x32xf32, #tpu.memory_space<vmem>>, %arg4: memref<32x32xf32, #tpu.memory_space<vmem>>, %arg5: memref<1x1x8xi32, #tpu.memory_space<vmem>>, %arg6: memref<1x8x8xf32, #tpu.memory_space<vmem>>) attributes {dimension_semantics = [#tpu.dimension_semantics<parallel>, #tpu.dimension_semantics<parallel>], iteration_bounds = array<i64: 2, 1>, scalar_prefetch = 0 : i64, scratch_operands = 0 : i64, tpu.core_type = #tpu.core_type<tc>, window_params = [{transform_indices = @transform_0, window_bounds = array<i64: 1, 8, 32>}, {pipeline_mode = #tpu.pipeline_mode<synchronous>, transform_indices = @transform_1, window_bounds = array<i64: 1, 8, 32>}, {pipeline_mode = #tpu.pipeline_mode<synchronous>, transform_indices = @transform_2, window_bounds = array<i64: 32, 32>}, {pipeline_mode = #tpu.pipeline_mode<synchronous>, transform_indices = @transform_3, window_bounds = array<i64: 1, 1, 8>}, {transform_indices = @transform_4, window_bounds = array<i64: 1, 8, 8>}]} {
    %c0 = arith.constant 0 : index
    %c0_0 = arith.constant 0 : index
    %c0_1 = arith.constant 0 : index
    %0 = vector.load %arg5[%c0, %c0_0, %c0_1] : memref<1x1x8xi32, #tpu.memory_space<vmem>>, vector<1x1x8xi32>
    %1 = vector.shape_cast %0 : vector<1x1x8xi32> to vector<1x8xi32>
    %c0_i32 = arith.constant 0 : i32
    %2 = vector.broadcast %c0_i32 : i32 to vector<1x8xi32>
    %3 = arith.cmpi ne, %1, %2 : vector<1x8xi32>
    %c0_2 = arith.constant 0 : index
    %c0_3 = arith.constant 0 : index
    %c0_4 = arith.constant 0 : index
    %4 = vector.load %arg2[%c0_2, %c0_3, %c0_4] : memref<1x8x32xf32, #tpu.memory_space<vmem>>, vector<1x8x32xf32>
    %5 = vector.shape_cast %4 : vector<1x8x32xf32> to vector<8x32xf32>
    %c0_5 = arith.constant 0 : index
    %c0_6 = arith.constant 0 : index
    %c0_7 = arith.constant 0 : index
    %6 = vector.load %arg3[%c0_5, %c0_6, %c0_7] : memref<1x8x32xf32, #tpu.memory_space<vmem>>, vector<1x8x32xf32>
    %7 = vector.shape_cast %6 : vector<1x8x32xf32> to vector<8x32xf32>
    %c0_8 = arith.constant 0 : index
    %c0_9 = arith.constant 0 : index
    %8 = vector.load %arg4[%c0_8, %c0_9] : memref<32x32xf32, #tpu.memory_space<vmem>>, vector<32x32xf32>
    %cst = arith.constant dense<0.000000e+00> : vector<8x32xf32>
    %9 = tpu.matmul %5, %8, %cst {dimension_numbers = #tpu.dot_dimension_numbers<[1], [0], [0], [1], [0, 0, 1, 1], [], []>} : vector<8x32xf32>, vector<32x32xf32>, vector<8x32xf32> -> vector<8x32xf32>
    %cst_10 = arith.constant dense<0.000000e+00> : vector<8x8xf32>
    %10 = tpu.matmul %9, %7, %cst_10 {dimension_numbers = #tpu.dot_dimension_numbers<[1], [1], [0], [0], [0, 0, 1, 0], [], []>} : vector<8x32xf32>, vector<8x32xf32>, vector<8x8xf32> -> vector<8x8xf32>
    %cst_11 = arith.constant -1.000000e+09 : f32
    %11 = vector.shape_cast %3 : vector<1x8xi1> to vector<1x8xi1>
    %12 = vector.broadcast %11 : vector<1x8xi1> to vector<8x8xi1>
    %13 = vector.broadcast %cst_11 : f32 to vector<8x8xf32>
    %14 = arith.select %12, %13, %10 : vector<8x8xi1>, vector<8x8xf32>
    %cst_12 = arith.constant dense<0xFF800000> : vector<8xf32>
    %15 = vector.multi_reduction <maximumf>, %14, %cst_12 [1] : vector<8x8xf32> to vector<8xf32>
    %16 = vector.shape_cast %15 : vector<8xf32> to vector<8x1xf32>
    %17 = vector.broadcast %16 : vector<8x1xf32> to vector<8x8xf32>
    %18 = arith.subf %14, %17 : vector<8x8xf32>
    %19 = math.exp %18 : vector<8x8xf32>
    %cst_13 = arith.constant dense<0.000000e+00> : vector<8xf32>
    %20 = vector.multi_reduction <add>, %19, %cst_13 [1] : vector<8x8xf32> to vector<8xf32>
    %21 = vector.shape_cast %20 : vector<8xf32> to vector<8x1xf32>
    %22 = tpu.reciprocal %21 {approx = true} : vector<8x1xf32> -> vector<8x1xf32>
    %23 = vector.broadcast %22 : vector<8x1xf32> to vector<8x8xf32>
    %24 = arith.mulf %19, %23 : vector<8x8xf32>
    %c0_14 = arith.constant 0 : index
    %c0_15 = arith.constant 0 : index
    %c0_16 = arith.constant 0 : index
    %25 = vector.load %arg6[%c0_14, %c0_15, %c0_16] : memref<1x8x8xf32, #tpu.memory_space<vmem>>, vector<1x8x8xf32>
    %26 = vector.shape_cast %25 : vector<1x8x8xf32> to vector<8x8xf32>
    %27 = vector.shape_cast %24 : vector<8x8xf32> to vector<1x8x8xf32>
    tpu.vector_store %arg6[%c0_14, %c0_15, %c0_16], %27 {strides = array<i32>} : memref<1x8x8xf32, #tpu.memory_space<vmem>>, vector<1x8x8xf32>,
    return
  }
  func.func @transform_0(%arg0: i32, %arg1: i32) -> (i32, i32, i32) {
    %c0_i32 = arith.constant 0 : i32
    %c0_i32_0 = arith.constant 0 : i32
    return %arg0, %arg1, %c0_i32 : i32, i32, i32
  }
  func.func @transform_1(%arg0: i32, %arg1: i32) -> (i32, i32, i32) {
    %c0_i32 = arith.constant 0 : i32
    %c0_i32_0 = arith.constant 0 : i32
    %c0_i32_1 = arith.constant 0 : i32
    return %arg0, %c0_i32, %c0_i32_0 : i32, i32, i32
  }
  func.func @transform_2(%arg0: i32, %arg1: i32) -> (i32, i32) {
    %c0_i32 = arith.constant 0 : i32
    %c0_i32_0 = arith.constant 0 : i32
    %c0_i32_1 = arith.constant 0 : i32
    return %c0_i32, %c0_i32_0 : i32, i32
  }
  func.func @transform_3(%arg0: i32, %arg1: i32) -> (i32, i32, i32) {
    %c0_i32 = arith.constant 0 : i32
    %c0_i32_0 = arith.constant 0 : i32
    %c0_i32_1 = arith.constant 0 : i32
    return %arg0, %c0_i32, %c0_i32_0 : i32, i32, i32
  }
  func.func @transform_4(%arg0: i32, %arg1: i32) -> (i32, i32, i32) {
    %c0_i32 = arith.constant 0 : i32
    %c0_i32_0 = arith.constant 0 : i32
    return %arg0, %arg1, %c0_i32 : i32, i32, i32
  }
}

module attributes {stable_mosaic.version = 11 : i64} {
  func.func @_attn_kernel_masked(%arg0: i32, %arg1: i32, %arg2: memref<1x8x32xf32, #tpu.memory_space<vmem>>, %arg3: memref<1x8x32xf32, #tpu.memory_space<vmem>>, %arg4: memref<32x32xf32, #tpu.memory_space<vmem>>, %arg5: memref<1x1x8xi32, #tpu.memory_space<vmem>>, %arg6: memref<1x8x8xf32, #tpu.memory_space<vmem>>) attributes {dimension_semantics = [#tpu.dimension_semantics<parallel>, #tpu.dimension_semantics<parallel>], iteration_bounds = array<i64: 2, 1>, scalar_prefetch = 0 : i64, scratch_operands = 0 : i64, tpu.core_type = #tpu.core_type<tc>, window_params = [{transform_indices = @transform_0, window_bounds = array<i64: 1, 8, 32>}, {transform_indices = @transform_1, window_bounds = array<i64: 1, 8, 32>}, {pipeline_mode = #tpu.pipeline_mode<synchronous>, transform_indices = @transform_2, window_bounds = array<i64: 32, 32>}, {transform_indices = @transform_3, window_bounds = array<i64: 1, 1, 8>}, {transform_indices = @transform_4, window_bounds = array<i64: 1, 8, 8>}]} {
    %c0 = arith.constant 0 : index
    %c0_0 = arith.constant 0 : index
    %c0_1 = arith.constant 0 : index
    %0 = vector.load %arg5[%c0, %c0_0, %c0_1] : memref<1x1x8xi32, #tpu.memory_space<vmem>>, vector<1x1x8xi32>
    %1 = vector.shape_cast %0 : vector<1x1x8xi32> to vector<1x8xi32>
    %c0_i32 = arith.constant 0 : i32
    %2 = vector.broadcast %c0_i32 : i32 to vector<1x8xi32>
    %3 = arith.cmpi ne, %1, %2 : vector<1x8xi32>
    %c0_2 = arith.constant 0 : index
    %c0_3 = arith.constant 0 : index
    %c0_4 = arith.constant 0 : index
    %4 = vector.load %arg2[%c0_2, %c0_3, %c0_4] : memref<1x8x32xf32, #tpu.memory_space<vmem>>, vector<1x8x32xf32>
    %5 = vector.shape_cast %4 : vector<1x8x32xf32> to vector<8x32xf32>
    %c0_5 = arith.constant 0 : index
    %c0_6 = arith.constant 0 : index
    %c0_7 = arith.constant 0 : index
    %6 = vector.load %arg3[%c0_5, %c0_6, %c0_7] : memref<1x8x32xf32, #tpu.memory_space<vmem>>, vector<1x8x32xf32>
    %7 = vector.shape_cast %6 : vector<1x8x32xf32> to vector<8x32xf32>
    %c0_8 = arith.constant 0 : index
    %c0_9 = arith.constant 0 : index
    %8 = vector.load %arg4[%c0_8, %c0_9] : memref<32x32xf32, #tpu.memory_space<vmem>>, vector<32x32xf32>
    %cst = arith.constant dense<0.000000e+00> : vector<8x32xf32>
    %9 = tpu.matmul %5, %8, %cst {dimension_numbers = #tpu.dot_dimension_numbers<[1], [0], [0], [1], [0, 0, 1, 1], [], []>} : vector<8x32xf32>, vector<32x32xf32>, vector<8x32xf32> -> vector<8x32xf32>
    %cst_10 = arith.constant dense<0.000000e+00> : vector<8x8xf32>
    %10 = tpu.matmul %9, %7, %cst_10 {dimension_numbers = #tpu.dot_dimension_numbers<[1], [1], [0], [0], [0, 0, 1, 0], [], []>} : vector<8x32xf32>, vector<8x32xf32>, vector<8x8xf32> -> vector<8x8xf32>
    %cst_11 = arith.constant -1.000000e+09 : f32
    %11 = vector.shape_cast %3 : vector<1x8xi1> to vector<1x8xi1>
    %12 = vector.broadcast %11 : vector<1x8xi1> to vector<8x8xi1>
    %13 = vector.broadcast %cst_11 : f32 to vector<8x8xf32>
    %14 = arith.select %12, %13, %10 : vector<8x8xi1>, vector<8x8xf32>
    %cst_12 = arith.constant dense<0xFF800000> : vector<8xf32>
    %15 = vector.multi_reduction <maximumf>, %14, %cst_12 [1] : vector<8x8xf32> to vector<8xf32>
    %16 = vector.shape_cast %15 : vector<8xf32> to vector<8x1xf32>
    %17 = vector.broadcast %16 : vector<8x1xf32> to vector<8x8xf32>
    %18 = arith.subf %14, %17 : vector<8x8xf32>
    %19 = math.exp %18 : vector<8x8xf32>
    %cst_13 = arith.constant dense<0.000000e+00> : vector<8xf32>
    %20 = vector.multi_reduction <add>, %19, %cst_13 [1] : vector<8x8xf32> to vector<8xf32>
    %21 = vector.shape_cast %20 : vector<8xf32> to vector<8x1xf32>
    %22 = tpu.reciprocal %21 {approx = true} : vector<8x1xf32> -> vector<8x1xf32>
    %23 = vector.broadcast %22 : vector<8x1xf32> to vector<8x8xf32>
    %24 = arith.mulf %19, %23 : vector<8x8xf32>
    %c0_14 = arith.constant 0 : index
    %c0_15 = arith.constant 0 : index
    %c0_16 = arith.constant 0 : index
    %25 = vector.load %arg6[%c0_14, %c0_15, %c0_16] : memref<1x8x8xf32, #tpu.memory_space<vmem>>, vector<1x8x8xf32>
    %26 = vector.shape_cast %25 : vector<1x8x8xf32> to vector<8x8xf32>
    %27 = vector.shape_cast %24 : vector<8x8xf32> to vector<1x8x8xf32>
    tpu.vector_store %arg6[%c0_14, %c0_15, %c0_16], %27 {strides = array<i32>} : memref<1x8x8xf32, #tpu.memory_space<vmem>>, vector<1x8x8xf32>,
    return
  }
  func.func @transform_0(%arg0: i32, %arg1: i32) -> (i32, i32, i32) {
    %c0_i32 = arith.constant 0 : i32
    %c0_i32_0 = arith.constant 0 : i32
    return %arg0, %arg1, %c0_i32 : i32, i32, i32
  }
  func.func @transform_1(%arg0: i32, %arg1: i32) -> (i32, i32, i32) {
    %c0_i32 = arith.constant 0 : i32
    %c0_i32_0 = arith.constant 0 : i32
    %c0_i32_1 = arith.constant 0 : i32
    return %arg0, %c0_i32, %c0_i32_0 : i32, i32, i32
  }
  func.func @transform_2(%arg0: i32, %arg1: i32) -> (i32, i32) {
    %c0_i32 = arith.constant 0 : i32
    %c0_i32_0 = arith.constant 0 : i32
    %c0_i32_1 = arith.constant 0 : i32
    return %c0_i32, %c0_i32_0 : i32, i32
  }
  func.func @transform_3(%arg0: i32, %arg1: i32) -> (i32, i32, i32) {
    %c0_i32 = arith.constant 0 : i32
    %c0_i32_0 = arith.constant 0 : i32
    %c0_i32_1 = arith.constant 0 : i32
    return %arg0, %c0_i32, %c0_i32_0 : i32, i32, i32
  }
  func.func @transform_4(%arg0: i32, %arg1: i32) -> (i32, i32, i32) {
    %c0_i32 = arith.constant 0 : i32
    %c0_i32_0 = arith.constant 0 : i32
    return %arg0, %arg1, %c0_i32 : i32, i32, i32
  }
}

</mosaic_0001>

<llo_original>
// kernel: tpu_custom_call.1
$region0: #{tpu_custom_call.1}
  #allocation0 [shape = 'u32[]', space=smem, size = 0x4, offset = 0x4, fixed_abs, tag = 'smem constant byte address 0x4 - core index']
  #allocation1 [shape = 'u32[144,128]{1,0:T(1,128)}', space=vmem, size = 0x12000, scoped, tag = 'internal scratch']
  %s0 = inlined_call_operand.hbm [shape: f32[2,8,32], index: 0, kind: input, shape index: {}]
  %s1 = inlined_call_operand.hbm [shape: f32[2,8,32], index: 1, kind: input, shape index: {}]
  %s2 = inlined_call_operand.hbm [shape: f32[32,32], index: 2, kind: input, shape index: {}]
  %s3 = inlined_call_operand.vmem [shape: s32[2,1,8], index: 3, kind: input, shape index: {}]
  %s4 = inlined_call_operand.hbm [shape: f32[2,8,8], index: 4, kind: output, shape index: {}]
  %s5 = sld [smem:[#allocation0]]
  $region61: #{tpu_custom_call.1} parent=0
    _
  %s7 = ssub.s32 1, %s5
  %s8 = scalar_select 0, %s7, %s5
  $region1: #{tpu_custom_call.1} parent=0
    #allocation2 [shape = 'u8[8192]{0}', space=vmem, size = 0x2000, scoped, tag = 'input window, operand 0']
    #allocation3 [shape = 's32[2]{0}', space=sflag, size = 0x8, scoped, tag = 'scoped memory for tpu_custom_call.1']
    #allocation4 [shape = 's32[2]{0}', space=sflag, size = 0x8, scoped, tag = 'scoped memory for tpu_custom_call.1']
    #allocation5 [shape = 'u8[4096]{0}', space=vmem, size = 0x1000, scoped, tag = 'input window, operand 1, single buffered']
    #allocation6 [shape = 's32[1]{0}', space=sflag, size = 0x4, scoped, tag = 'scoped memory for tpu_custom_call.1']
    #allocation7 [shape = 'u8[16384]{0}', space=vmem, size = 0x4000, scoped, tag = 'input window, operand 2, single buffered']
    #allocation8 [shape = 'u8[8192]{0}', space=vmem, size = 0x2000, scoped, tag = 'output window, operand 0']
    %9 = vsyncpa [#allocation3], 0
    %s10 = scalar_lea.sflag [#allocation3], 1
    %11 = vsyncpa %s10, 0
    %12 = vsyncpa [#allocation6], 0
    %13 = vsyncpa [#allocation4], 0
    %s14 = scalar_lea.sflag [#allocation4], 1
    %15 = vsyncpa %s14, 0
    loop: start=0, step=1, limit=4
    $region2: #{tpu_custom_call.1} parent=1 // loop_pre_header
      _
    $region3: #{tpu_custom_call.1} parent=1 // loop_header
      %s17 = sphi 0, %s21
      %p18 = scmp.ge.s32.totalorder %s17, 4
      %s24 = sphi 0, %s36
      %s25 = sphi 0, %s32
      %s26 = sphi 0, %s24
      %s27 = sphi 0, %s25
      %s28 = sphi 0, %s26
      %s29 = sphi 0, %s27
      %s41 = sphi 0, %s43
      %s44 = sphi 0, %s41
      %s45 = sphi 0, %s44
      %s61 = sphi 0, %s45
      %s67 = sphi 0, %s69
      %s70 = sphi 0, %s67
      %s71 = sphi 0, %s70
      %s87 = sphi 0, %s71
      %s91 = sphi 0, %s91
      %s93 = sphi 0, %s91
      %s94 = sphi 0, %s93
      %s108 = sphi 0, %s94
      %s114 = sphi 0, %s116
      %s117 = sphi 0, %s114
      %s118 = sphi 0, %s117
      %s134 = sphi 0, %s118
      %s142 = sphi 0, %s144
      %s145 = sphi 0, %s142
      %s146 = sphi 0, %s145
      %s162 = sphi 0, %s146
    $region4: #{tpu_custom_call.1} parent=1 // loop_header_branch
      %20 = sbr.rel (%p18) target = $region8
    $region5: #{tpu_custom_call.1} parent=1 // loop_body
      %s22 = ssub.s32 %s17, 1
      %s23 = ssub.s32 %s17, 2
      %s30 = sadd.s32 1, %s25
      %p31 = scmp.ge.s32.totalorder %s30, 1
      %s32 = scalar_select %p31, 0, %s30
      %s33 = sadd.s32 1, %s24
      %s34 = scalar_select %p31, %s33, %s24
      %p35 = scmp.ge.s32.totalorder %s34, 2
      %s36 = scalar_select %p35, 0, %s34
      %s37 = ssub.s32 %s24, %s36
      %s38 = ssub.s32 %s25, %s32
      %s39 = sor.u32 %s37, %s38
      %p40 = scmp.eq.s32.totalorder %s39, 0
      %s42 = sadd.s32 %s41, 1
      %s43 = scalar_select %p40, %s41, %s42
      %p46 = pneg %p40
      %p47 = scmp.eq.s32.totalorder %s17, 1
      %p48 = por %p46, %p47
      %p49 = scmp.ne.s32.totalorder %s41, %s44
      %p50 = scmp.eq.s32.totalorder %s17, 0
      %p51 = por %p49, %p50
      %p52 = scmp.ne.s32.totalorder %s41, %s44
      %p53 = scmp.eq.s32.totalorder %s22, 1
      %p54 = por %p52, %p53
      %p55 = scmp.ne.s32.totalorder %s44, %s45
      %p56 = scmp.eq.s32.totalorder %s22, 0
      %p57 = por %p55, %p56
      %p58 = scmp.ne.s32.totalorder %s44, %s45
      %p59 = scmp.eq.s32.totalorder %s23, 1
      %p60 = por %p58, %p59
      %p62 = scmp.ne.s32.totalorder %s45, %s61
      %p63 = scmp.eq.s32.totalorder %s23, 0
      %p64 = por %p62, %p63
      %s65 = ssub.s32 %s24, %s36
      %p66 = scmp.eq.s32.totalorder %s65, 0
      %s68 = sadd.s32 %s67, 1
      %s69 = scalar_select %p66, %s67, %s68
      %p72 = pneg %p66
      %p73 = scmp.eq.s32.totalorder %s17, 1
      %p74 = por %p72, %p73
      %p75 = scmp.ne.s32.totalorder %s67, %s70
      %p76 = scmp.eq.s32.totalorder %s17, 0
      %p77 = por %p75, %p76
      %p78 = scmp.ne.s32.totalorder %s67, %s70
      %p79 = scmp.eq.s32.totalorder %s22, 1
      %p80 = por %p78, %p79
      %p81 = scmp.ne.s32.totalorder %s70, %s71
      %p82 = scmp.eq.s32.totalorder %s22, 0
      %p83 = por %p81, %p82
      %p84 = scmp.ne.s32.totalorder %s70, %s71
      %p85 = scmp.eq.s32.totalorder %s23, 1
      %p86 = por %p84, %p85
      %p88 = scmp.ne.s32.totalorder %s71, %s87
      %p89 = scmp.eq.s32.totalorder %s23, 0
      %p90 = por %p88, %p89
      %s92 = sadd.s32 %s91, 1
      %p95 = scmp.eq.s32.totalorder %s17, 1
      %p96 = scmp.ne.s32.totalorder %s91, %s93
      %p97 = scmp.eq.s32.totalorder %s17, 0
      %p98 = por %p96, %p97
      %p99 = scmp.ne.s32.totalorder %s91, %s93
      %p100 = scmp.eq.s32.totalorder %s22, 1
      %p101 = por %p99, %p100
      %p102 = scmp.ne.s32.totalorder %s93, %s94
      %p103 = scmp.eq.s32.totalorder %s22, 0
      %p104 = por %p102, %p103
      %p105 = scmp.ne.s32.totalorder %s93, %s94
      %p106 = scmp.eq.s32.totalorder %s23, 1
      %p107 = por %p105, %p106
      %p109 = scmp.ne.s32.totalorder %s94, %s108
      %p110 = scmp.eq.s32.totalorder %s23, 0
      %p111 = por %p109, %p110
      %s112 = ssub.s32 %s24, %s36
      %p113 = scmp.eq.s32.totalorder %s112, 0
      %s115 = sadd.s32 %s114, 1
      %s116 = scalar_select %p113, %s114, %s115
      %p119 = pneg %p113
      %p120 = scmp.eq.s32.totalorder %s17, 1
      %p121 = por %p119, %p120
      %p122 = scmp.ne.s32.totalorder %s114, %s117
      %p123 = scmp.eq.s32.totalorder %s17, 0
      %p124 = por %p122, %p123
      %p125 = scmp.ne.s32.totalorder %s114, %s117
      %p126 = scmp.eq.s32.totalorder %s22, 1
      %p127 = por %p125, %p126
      %p128 = scmp.ne.s32.totalorder %s117, %s118
      %p129 = scmp.eq.s32.totalorder %s22, 0
      %p130 = por %p128, %p129
      %p131 = scmp.ne.s32.totalorder %s117, %s118
      %p132 = scmp.eq.s32.totalorder %s23, 1
      %p133 = por %p131, %p132
      %p135 = scmp.ne.s32.totalorder %s118, %s134
      %p136 = scmp.eq.s32.totalorder %s23, 0
      %p137 = por %p135, %p136
      %s138 = ssub.s32 %s24, %s36
      %s139 = ssub.s32 %s25, %s32
      %s140 = sor.u32 %s138, %s139
      %p141 = scmp.eq.s32.totalorder %s140, 0
      %s143 = sadd.s32 %s142, 1
      %s144 = scalar_select %p141, %s142, %s143
      %p147 = pneg %p141
      %p148 = scmp.eq.s32.totalorder %s17, 1
      %p149 = por %p147, %p148
      %p150 = scmp.ne.s32.totalorder %s142, %s145
      %p151 = scmp.eq.s32.totalorder %s17, 0
      %p152 = por %p150, %p151
      %p153 = scmp.ne.s32.totalorder %s142, %s145
      %p154 = scmp.eq.s32.totalorder %s22, 1
      %p155 = por %p153, %p154
      %p156 = scmp.ne.s32.totalorder %s145, %s146
      %p157 = scmp.eq.s32.totalorder %s22, 0
      %p158 = por %p156, %p157
      %p159 = scmp.ne.s32.totalorder %s145, %s146
      %p160 = scmp.eq.s32.totalorder %s23, 1
      %p161 = por %p159, %p160
      %p163 = scmp.ne.s32.totalorder %s146, %s162
      %p164 = scmp.eq.s32.totalorder %s23, 0
      %p165 = por %p163, %p164
      %p166 = scmp.le.s32.totalorder 1, %s17
      %p167 = scmp.lt.s32.totalorder %s17, 3
      %p168 = pnand %p166, %p167
      %p169 = pneg %p168
      // Predicated region
      $region9: #{tpu_custom_call.1} parent=5 // pred_check
        _
      $region10: #{tpu_custom_call.1} parent=5 // pred_check_branch
        %171 = sbr.rel (%p168) target = $region12
      $region11: #{tpu_custom_call.1} parent=5 // pred_region
        %s172 = ssub.s32 %s17, 1
        // Predicated region
        $region13: #{tpu_custom_call.1} parent=11 // pred_check
          %p173 = pneg %p83
        $region14: #{tpu_custom_call.1} parent=11 // pred_check_branch
          %175 = sbr.rel (%p173) target = $region16
        $region15: #{tpu_custom_call.1} parent=11 // pred_region
          %s177 = ssub.s32 128, 128
          %178 = vsyncadd [#allocation6], %s177
          %s179 = smul.addr %s26, 128
          %s180 = scalar_lea.hbm %s1, %s179
          %s182 = sshll.u32 [#allocation5], 4
          %s183 = int_to_ptr.vmem [resolvable:$true] %s182
          %185 = dma.hbm_to_vmem [thread:$0]  %s180, 128, %s183, [#allocation6]
        $region16: #{tpu_custom_call.1} parent=11 // pred_fallthru
          _
        // Predicated region
        $region17: #{tpu_custom_call.1} parent=11 // pred_check
          %p186 = pneg %p104
        $region18: #{tpu_custom_call.1} parent=11 // pred_check_branch
          %188 = sbr.rel (%p186) target = $region20
        $region19: #{tpu_custom_call.1} parent=11 // pred_region
          %s190 = ssub.s32 512, 512
          %191 = vsyncadd [#allocation6], %s190
          %s192 = sshll.u32 [#allocation7], 4
          %s193 = int_to_ptr.vmem [resolvable:$true] %s192
          %198 = dma.hbm_to_vmem [thread:$0]  %s2, 512, %s193, [#allocation6], 128, 128, 8
        $region20: #{tpu_custom_call.1} parent=11 // pred_fallthru
          _
        // Predicated region
        $region21: #{tpu_custom_call.1} parent=11 // pred_check
          %p199 = pneg %p130
        $region22: #{tpu_custom_call.1} parent=11 // pred_check_branch
          %201 = sbr.rel (%p199) target = $region24
        $region23: #{tpu_custom_call.1} parent=11 // pred_region
          %p202 = scmp.lt.s32.totalorder %s26, 1
          %s203 = scalar_select %p202, %s26, 1
          %s204 = scalar_lea.vmem %s3, %s203
        $region24: #{tpu_custom_call.1} parent=11 // pred_fallthru
          _
      $region12: #{tpu_custom_call.1} parent=5 // pred_fallthru
        _
      %p205 = scmp.lt.s32.totalorder %s17, 2
      // Predicated region
      $region25: #{tpu_custom_call.1} parent=5 // pred_check
        %p206 = pneg %p205
      $region26: #{tpu_custom_call.1} parent=5 // pred_check_branch
        %208 = sbr.rel (%p206) target = $region28
      $region27: #{tpu_custom_call.1} parent=5 // pred_region
        // Predicated region
        $region29: #{tpu_custom_call.1} parent=27 // pred_check
          %p209 = pneg %p51
        $region30: #{tpu_custom_call.1} parent=27 // pred_check_branch
          %211 = sbr.rel (%p209) target = $region32
        $region31: #{tpu_custom_call.1} parent=27 // pred_region
          %s212 = sand.u32 %s41, 1
          %s213 = scalar_lea.sflag [#allocation3], %s212
          %s214 = sand.u32 %s41, 1
          %s215 = smul.addr %s214, 8
          %s216 = scalar_lea.vmem [#allocation2], %s215
          %s218 = ssub.s32 128, 128
          %219 = vsyncadd %s213, %s218
          %s220 = sadd.s32 %s25, %s24
          %s221 = smul.addr %s220, 128
          %s222 = scalar_lea.hbm %s0, %s221
          %s224 = sshll.u32 %s216, 4
          %s225 = int_to_ptr.vmem [resolvable:$true] %s224
          %227 = dma.hbm_to_vmem [thread:$0]  %s222, 128, %s225, %s213
        $region32: #{tpu_custom_call.1} parent=27 // pred_fallthru
          _
      $region28: #{tpu_custom_call.1} parent=5 // pred_fallthru
        _
      %p228 = scmp.le.s32.totalorder 1, %s17
      %p229 = scmp.lt.s32.totalorder %s17, 3
      %p230 = pnand %p228, %p229
      %p231 = pneg %p230
      // Predicated region
      $region33: #{tpu_custom_call.1} parent=5 // pred_check
        _
      $region34: #{tpu_custom_call.1} parent=5 // pred_check_branch
        %233 = sbr.rel (%p230) target = $region36
      $region35: #{tpu_custom_call.1} parent=5 // pred_region
        %s234 = ssub.s32 %s17, 1
        %s235 = sand.u32 %s44, 1
        %s236 = scalar_lea.sflag [#allocation3], %s235
        %s237 = sand.u32 %s44, 1
        %s238 = smul.addr %s237, 8
        %s239 = scalar_lea.vmem [#allocation2], %s238
        // Predicated region
        $region37: #{tpu_custom_call.1} parent=35 // pred_check
          %p240 = pneg %p57
        $region38: #{tpu_custom_call.1} parent=35 // pred_check_branch
          %242 = sbr.rel (%p240) target = $region40
        $region39: #{tpu_custom_call.1} parent=35 // pred_region
          %243 = dma.done %s236, 128
        $region40: #{tpu_custom_call.1} parent=35 // pred_fallthru
          _
        // Predicated region
        $region41: #{tpu_custom_call.1} parent=35 // pred_check
          %p244 = pneg %p83
        $region42: #{tpu_custom_call.1} parent=35 // pred_check_branch
          %246 = sbr.rel (%p244) target = $region44
        $region43: #{tpu_custom_call.1} parent=35 // pred_region
          %247 = dma.done [#allocation6], 128
        $region44: #{tpu_custom_call.1} parent=35 // pred_fallthru
          _
        // Predicated region
        $region45: #{tpu_custom_call.1} parent=35 // pred_check
          %p248 = pneg %p104
        $region46: #{tpu_custom_call.1} parent=35 // pred_check_branch
          %250 = sbr.rel (%p248) target = $region48
        $region47: #{tpu_custom_call.1} parent=35 // pred_region
          %251 = dma.done [#allocation6], 512
        $region48: #{tpu_custom_call.1} parent=35 // pred_fallthru
          _
        %s252 = sand.u32 %s44, 1
        %s253 = scalar_lea.sflag [#allocation3], %s252
        %s254 = sand.u32 %s44, 1
        %s255 = smul.addr %s254, 8
        %s256 = scalar_lea.vmem [#allocation2], %s255
        %p257 = pneg %p57
        %p258 = pneg %p54
        %p259 = pneg %p83
        %p260 = pneg %p80
        %p261 = pneg %p104
        %p262 = pneg %p101
        %p263 = scmp.lt.s32.totalorder %s26, 1
        %s264 = scalar_select %p263, %s26, 1
        %s265 = scalar_lea.vmem %s3, %s264
        %p266 = pneg %p130
        %p267 = pneg %p127
        %p268 = pneg %p158
        %p269 = pneg %p155
        %s270 = sand.u32 %s145, 1
        %s271 = scalar_lea.sflag [#allocation4], %s270
        %s272 = sand.u32 %s145, 1
        %s273 = smul.addr %s272, 8
        %s274 = scalar_lea.vmem [#allocation8], %s273
        %p275 = scmp.lt.s32.totalorder %s26, 1
        %s276 = scalar_select %p275, %s26, 1
        %s277 = scalar_lea.vmem %s3, %s276
        %v278 = vld [vmem:[%s277] sm:$0x1]
        %vm279 = vcmp.ne.s32.totalorder %v278, 0
        %v280 = vld [vmem:[%s239] sm:$0xff]
        %v281 = vld [vmem:[#allocation5] sm:$0xff]
        %v282 = vld [vmem:[#allocation7] sm:$0xff]
        %v283 = vld [vmem:[#allocation7 + $0x8] sm:$0xff]
        %v284 = vld [vmem:[#allocation7 + $0x10] sm:$0xff]
        %v285 = vld [vmem:[#allocation7 + $0x18] sm:$0xff]
        %vm286 = vcmask 261120
        %v288 = vsel %vm286, %v280, 0
        %290 = vmatprep.subr.mxu0 0.0
        %291 = vmatpush1.msra.mxu0 %v282
        %292 = vmatprep.subr.mxu0 0.0
        %293 = vmatpush1.msra.mxu0 %v283
        %294 = vmatprep.subr.mxu0 0.0
        %295 = vmatpush1.msra.mxu0 %v284
        %296 = vmatprep.subr.mxu0 0.0
        %297 = vmatpush1.msra.mxu0 %v285
        %298 = vmatprep.subr.mxu0 0.0
        %299 = vmatpush1.msra.mxu0 0.0
        %300 = vmatprep.subr.mxu0 0.0
        %301 = vmatpush1.msra.mxu0 0.0
        %302 = vmatprep.subr.mxu0 0.0
        %303 = vmatpush1.msra.mxu0 0.0
        %304 = vmatprep.subr.mxu0 0.0
        %305 = vmatpush1.msra.mxu0 0.0
        %306 = vmatprep.subr.mxu0 0.0
        %307 = vmatpush1.msra.mxu0 0.0
        %308 = vmatprep.subr.mxu0 0.0
        %309 = vmatpush1.msra.mxu0 0.0
        %310 = vmatprep.subr.mxu0 0.0
        %311 = vmatpush1.msra.mxu0 0.0
        %312 = vmatprep.subr.mxu0 0.0
        %313 = vmatpush1.msra.mxu0 0.0
        %314 = vmatprep.subr.mxu0 0.0
        %315 = vmatpush1.msra.mxu0 0.0
        %316 = vmatprep.subr.mxu0 0.0
        %317 = vmatpush1.msra.mxu0 0.0
        %318 = vmatprep.subr.mxu0 0.0
        %319 = vmatpush1.msra.mxu0 0.0
        %320 = vmatprep.subr.mxu0 0.0
        %321 = vmatpush1.msra.mxu0 0.0
        %322 = vmatprep.subr.mxu0 0.0
        %323 = vmatpush1.msra.mxu0 0.0
        %324 = vmatprep.subr.mxu0 0.0
        %325 = vmatpush1.msra.mxu0 0.0
        %326 = vmatprep.subr.mxu0 0.0
        %327 = vmatpush1.msra.mxu0 0.0
        %328 = vmatprep.subr.mxu0 0.0
        %329 = vmatpush1.msra.mxu0 0.0
        %330 = vmatprep.subr.mxu0 0.0
        %331 = vmatpush1.msra.mxu0 0.0
        %332 = vmatprep.subr.mxu0 0.0
        %333 = vmatpush1.msra.mxu0 0.0
        %334 = vmatprep.subr.mxu0 0.0
        %335 = vmatpush1.msra.mxu0 0.0
        %336 = vmatprep.subr.mxu0 0.0
        %337 = vmatpush1.msra.mxu0 0.0
        %338 = vmatprep.subr.mxu0 0.0
        %339 = vmatpush1.msra.mxu0 0.0
        %340 = vmatprep.subr.mxu0 0.0
        %341 = vmatpush1.msra.mxu0 0.0
        %342 = vmatprep.subr.mxu0 0.0
        %343 = vmatpush1.msra.mxu0 0.0
        %344 = vmatprep.subr.mxu0 0.0
        %345 = vmatpush1.msra.mxu0 0.0
        %346 = vmatprep.subr.mxu0 0.0
        %347 = vmatpush1.msra.mxu0 0.0
        %348 = vmatprep.subr.mxu0 0.0
        %349 = vmatpush1.msra.mxu0 0.0
        %350 = vmatprep.subr.mxu0 0.0
        %351 = vmatpush1.msra.mxu0 0.0
        %352 = vmatprep.subr.mxu0 0.0
        %353 = vmatpush1.msra.mxu0 0.0
        %354 = vmatprep.mubr.f32.mxu0 0.0
        %355 = vmatmul.mubr.f32.gmra.mrb[0].mxu0 %v288
        %v356 = vpop.f32.mrb[0].mxu0
        %v357 = vadd.f32 0.0, %v356
        %v358 = vpop.f32.mrb[0].mxu0
        %359 = vdwg.mxu0
        %v361 = vsel %vm286, %v357, 0
        %v364 = vsel %vm286, %v281, 0
        %366 = vmatprep.subr.mxu0 0.0
        %367 = vmatpush1.xpose.msra.mxu0 %v364
        %368 = vmatprep.subr.mxu0 0.0
        %369 = vmatpush1.xpose.msra.mxu0 0.0
        %370 = vmatprep.subr.mxu0 0.0
        %371 = vmatpush1.xpose.msra.mxu0 0.0
        %372 = vmatprep.subr.mxu0 0.0
        %373 = vmatpush1.xpose.msra.mxu0 0.0
        %374 = vmatprep.subr.mxu0 0.0
        %375 = vmatpush1.xpose.msra.mxu0 0.0
        %376 = vmatprep.subr.mxu0 0.0
        %377 = vmatpush1.xpose.msra.mxu0 0.0
        %378 = vmatprep.subr.mxu0 0.0
        %379 = vmatpush1.xpose.msra.mxu0 0.0
        %380 = vmatprep.subr.mxu0 0.0
        %381 = vmatpush1.xpose.msra.mxu0 0.0
        %382 = vmatprep.subr.mxu0 0.0
        %383 = vmatpush1.xpose.msra.mxu0 0.0
        %384 = vmatprep.subr.mxu0 0.0
        %385 = vmatpush1.xpose.msra.mxu0 0.0
        %386 = vmatprep.subr.mxu0 0.0
        %387 = vmatpush1.xpose.msra.mxu0 0.0
        %388 = vmatprep.subr.mxu0 0.0
        %389 = vmatpush1.xpose.msra.mxu0 0.0
        %390 = vmatprep.subr.mxu0 0.0
        %391 = vmatpush1.xpose.msra.mxu0 0.0
        %392 = vmatprep.subr.mxu0 0.0
        %393 = vmatpush1.xpose.msra.mxu0 0.0
        %394 = vmatprep.subr.mxu0 0.0
        %395 = vmatpush1.xpose.msra.mxu0 0.0
        %396 = vmatprep.subr.mxu0 0.0
        %397 = vmatpush1.xpose.msra.mxu0 0.0
        %398 = vmatprep.subr.mxu0 0.0
        %399 = vmatpush1.xpose.msra.mxu0 0.0
        %400 = vmatprep.subr.mxu0 0.0
        %401 = vmatpush1.xpose.msra.mxu0 0.0
        %402 = vmatprep.subr.mxu0 0.0
        %403 = vmatpush1.xpose.msra.mxu0 0.0
        %404 = vmatprep.subr.mxu0 0.0
        %405 = vmatpush1.xpose.msra.mxu0 0.0
        %406 = vmatprep.subr.mxu0 0.0
        %407 = vmatpush1.xpose.msra.mxu0 0.0
        %408 = vmatprep.subr.mxu0 0.0
        %409 = vmatpush1.xpose.msra.mxu0 0.0
        %410 = vmatprep.subr.mxu0 0.0
        %411 = vmatpush1.xpose.msra.mxu0 0.0
        %412 = vmatprep.subr.mxu0 0.0
        %413 = vmatpush1.xpose.msra.mxu0 0.0
        %414 = vmatprep.subr.mxu0 0.0
        %415 = vmatpush1.xpose.msra.mxu0 0.0
        %416 = vmatprep.subr.mxu0 0.0
        %417 = vmatpush1.xpose.msra.mxu0 0.0
        %418 = vmatprep.subr.mxu0 0.0
        %419 = vmatpush1.xpose.msra.mxu0 0.0
        %420 = vmatprep.subr.mxu0 0.0
        %421 = vmatpush1.xpose.msra.mxu0 0.0
        %422 = vmatprep.subr.mxu0 0.0
        %423 = vmatpush1.xpose.msra.mxu0 0.0
        %424 = vmatprep.subr.mxu0 0.0
        %425 = vmatpush1.xpose.msra.mxu0 0.0
        %426 = vmatprep.subr.mxu0 0.0
        %427 = vmatpush1.xpose.msra.mxu0 0.0
        %428 = vmatprep.subr.mxu0 0.0
        %429 = vmatpush1.xpose.msra.mxu0 0.0
        %430 = vmatprep.mubr.f32.mxu0 0.0
        %431 = vmatmul.mubr.f32.gmra.mrb[0].mxu0 %v361
        %v432 = vpop.f32.mrb[0].mxu0
        %v433 = vadd.f32 0.0, %v432
        %v434 = vpop.f32.mrb[0].mxu0
        %435 = vdwg.mxu0
        %v436 = vsel %vm279, 1, 0
        %v437 = vlaneseq
        %v438 = vshrl.u32 %v437, 7
        %v439 = vsub.s32 0, %v438
        %v440 = vrot.slane %v436, %v439
        %vm441 = vcmp.eq.s32.totalorder %v440, 1
        %v442 = vsel %vm441, -1e+09, %v433
        %vm443 = vcmask 64512
        %v444 = vsel %vm443, %v442, -inf
        %445 = vmax.xlane.f32.xlu0 %v444
        %v446 = vpop.xlane.xlu0 %445
        %v447 = vsub.f32 %v442, %v446
        %v448 = vmul.f32 %v447, 1.442695
        %v449 = vpow.pop %v448
        %v450 = vsel %vm443, %v449, 0.0
        %451 = vadd.xlane.f32.xlu0 %v450
        %v452 = vpop.xlane.xlu0 %451
        %v453 = vrcp.pop %v452
        %v454 = vmul.f32 %v449, %v453
        %455 = vst.msk [vmem:[%s274] sm:$0xff] %vm443, %v454
        %s456 = sand.u32 %s145, 1
        %s457 = scalar_lea.sflag [#allocation4], %s456
        %s458 = sand.u32 %s145, 1
        %s459 = smul.addr %s458, 8
        %s460 = scalar_lea.vmem [#allocation8], %s459
        // Predicated region
        $region49: #{tpu_custom_call.1} parent=35 // pred_check
          %p461 = pneg %p155
        $region50: #{tpu_custom_call.1} parent=35 // pred_check_branch
          %463 = sbr.rel (%p461) target = $region52
        $region51: #{tpu_custom_call.1} parent=35 // pred_region
          %s465 = ssub.s32 128, 128
          %466 = vsyncadd %s457, %s465
          %s467 = sadd.s32 %s27, %s26
          %s468 = smul.addr %s467, 128
          %s469 = scalar_lea.hbm %s4, %s468
          %s471 = sshll.u32 %s460, 4
          %s472 = int_to_ptr.vmem [resolvable:$true] %s471
          %474 = dma.vmem_to_hbm [thread:$0]  %s472, 128, %s469, %s457
        $region52: #{tpu_custom_call.1} parent=35 // pred_fallthru
          _
      $region36: #{tpu_custom_call.1} parent=5 // pred_fallthru
        _
      %p475 = scmp.le.s32.totalorder 2, %s17
      // Predicated region
      $region53: #{tpu_custom_call.1} parent=5 // pred_check
        %p476 = pneg %p475
      $region54: #{tpu_custom_call.1} parent=5 // pred_check_branch
        %478 = sbr.rel (%p476) target = $region56
      $region55: #{tpu_custom_call.1} parent=5 // pred_region
        %s479 = ssub.s32 %s17, 2
        // Predicated region
        $region57: #{tpu_custom_call.1} parent=55 // pred_check
          %p480 = pneg %p161
        $region58: #{tpu_custom_call.1} parent=55 // pred_check_branch
          %482 = sbr.rel (%p480) target = $region60
        $region59: #{tpu_custom_call.1} parent=55 // pred_region
          %s483 = sand.u32 %s146, 1
          %s484 = scalar_lea.sflag [#allocation4], %s483
          %s485 = sand.u32 %s146, 1
          %s486 = smul.addr %s485, 8
          %s487 = scalar_lea.vmem [#allocation8], %s486
          %488 = dma.done %s484, 128
        $region60: #{tpu_custom_call.1} parent=55 // pred_fallthru
          _
      $region56: #{tpu_custom_call.1} parent=5 // pred_fallthru
        _
    $region6: #{tpu_custom_call.1} parent=1 // loop_footer
      %s21 = sadd.s32 1, %s17
    $region7: #{tpu_custom_call.1} parent=1 // loop_footer_branch
      %16 = sbr.rel target = $region3
    $region8: #{tpu_custom_call.1} parent=1 // loop_exit
      _
    %489 = vsyncpa [#allocation3], 1
    %s490 = scalar_lea.sflag [#allocation3], 1
    %491 = vsyncpa %s490, 1
    %492 = vsyncpa [#allocation6], 1
    %493 = vsyncpa [#allocation4], 1
    %s494 = scalar_lea.sflag [#allocation4], 1
    %495 = vsyncpa %s494, 1

// kernel: tpu_custom_call.1
$region0: #{tpu_custom_call.1}
  #allocation0 [shape = 'u32[]', space=smem, size = 0x4, offset = 0x4, fixed_abs, tag = 'smem constant byte address 0x4 - core index']
  #allocation1 [shape = 'u32[144,128]{1,0:T(1,128)}', space=vmem, size = 0x12000, scoped, tag = 'internal scratch']
  %s0 = inlined_call_operand.hbm [shape: f32[2,8,32], index: 0, kind: input, shape index: {}]
  %s1 = inlined_call_operand.hbm [shape: f32[2,8,32], index: 1, kind: input, shape index: {}]
  %s2 = inlined_call_operand.hbm [shape: f32[32,32], index: 2, kind: input, shape index: {}]
  %s3 = inlined_call_operand.vmem [shape: s32[2,1,8], index: 3, kind: input, shape index: {}]
  %s4 = inlined_call_operand.hbm [shape: f32[2,8,8], index: 4, kind: output, shape index: {}]
  %s5 = sld [smem:[#allocation0]]
  $region61: #{tpu_custom_call.1} parent=0
    _
  %s7 = ssub.s32 1, %s5
  %s8 = scalar_select 0, %s7, %s5
  $region1: #{tpu_custom_call.1} parent=0
    #allocation2 [shape = 'u8[8192]{0}', space=vmem, size = 0x2000, scoped, tag = 'input window, operand 0']
    #allocation3 [shape = 's32[2]{0}', space=sflag, size = 0x8, scoped, tag = 'scoped memory for tpu_custom_call.1']
    #allocation4 [shape = 's32[2]{0}', space=sflag, size = 0x8, scoped, tag = 'scoped memory for tpu_custom_call.1']
    #allocation5 [shape = 'u8[8192]{0}', space=vmem, size = 0x2000, scoped, tag = 'input window, operand 1']
    #allocation6 [shape = 's32[2]{0}', space=sflag, size = 0x8, scoped, tag = 'scoped memory for tpu_custom_call.1']
    #allocation7 [shape = 'u8[16384]{0}', space=vmem, size = 0x4000, scoped, tag = 'input window, operand 2, single buffered']
    #allocation8 [shape = 'u8[8192]{0}', space=vmem, size = 0x2000, scoped, tag = 'output window, operand 0']
    %9 = vsyncpa [#allocation3], 0
    %s10 = scalar_lea.sflag [#allocation3], 1
    %11 = vsyncpa %s10, 0
    %12 = vsyncpa [#allocation6], 0
    %s13 = scalar_lea.sflag [#allocation6], 1
    %14 = vsyncpa %s13, 0
    %15 = vsyncpa [#allocation4], 0
    %s16 = scalar_lea.sflag [#allocation4], 1
    %17 = vsyncpa %s16, 0
    loop: start=0, step=1, limit=4
    $region2: #{tpu_custom_call.1} parent=1 // loop_pre_header
      _
    $region3: #{tpu_custom_call.1} parent=1 // loop_header
      %s19 = sphi 0, %s23
      %p20 = scmp.ge.s32.totalorder %s19, 4
      %s26 = sphi 0, %s38
      %s27 = sphi 0, %s34
      %s28 = sphi 0, %s26
      %s29 = sphi 0, %s27
      %s30 = sphi 0, %s28
      %s31 = sphi 0, %s29
      %s43 = sphi 0, %s45
      %s46 = sphi 0, %s43
      %s47 = sphi 0, %s46
      %s63 = sphi 0, %s47
      %s69 = sphi 0, %s71
      %s72 = sphi 0, %s69
      %s73 = sphi 0, %s72
      %s89 = sphi 0, %s73
      %s93 = sphi 0, %s93
      %s95 = sphi 0, %s93
      %s96 = sphi 0, %s95
      %s110 = sphi 0, %s96
      %s116 = sphi 0, %s118
      %s119 = sphi 0, %s116
      %s120 = sphi 0, %s119
      %s136 = sphi 0, %s120
      %s144 = sphi 0, %s146
      %s147 = sphi 0, %s144
      %s148 = sphi 0, %s147
      %s164 = sphi 0, %s148
    $region4: #{tpu_custom_call.1} parent=1 // loop_header_branch
      %22 = sbr.rel (%p20) target = $region8
    $region5: #{tpu_custom_call.1} parent=1 // loop_body
      %s24 = ssub.s32 %s19, 1
      %s25 = ssub.s32 %s19, 2
      %s32 = sadd.s32 1, %s27
      %p33 = scmp.ge.s32.totalorder %s32, 1
      %s34 = scalar_select %p33, 0, %s32
      %s35 = sadd.s32 1, %s26
      %s36 = scalar_select %p33, %s35, %s26
      %p37 = scmp.ge.s32.totalorder %s36, 2
      %s38 = scalar_select %p37, 0, %s36
      %s39 = ssub.s32 %s26, %s38
      %s40 = ssub.s32 %s27, %s34
      %s41 = sor.u32 %s39, %s40
      %p42 = scmp.eq.s32.totalorder %s41, 0
      %s44 = sadd.s32 %s43, 1
      %s45 = scalar_select %p42, %s43, %s44
      %p48 = pneg %p42
      %p49 = scmp.eq.s32.totalorder %s19, 1
      %p50 = por %p48, %p49
      %p51 = scmp.ne.s32.totalorder %s43, %s46
      %p52 = scmp.eq.s32.totalorder %s19, 0
      %p53 = por %p51, %p52
      %p54 = scmp.ne.s32.totalorder %s43, %s46
      %p55 = scmp.eq.s32.totalorder %s24, 1
      %p56 = por %p54, %p55
      %p57 = scmp.ne.s32.totalorder %s46, %s47
      %p58 = scmp.eq.s32.totalorder %s24, 0
      %p59 = por %p57, %p58
      %p60 = scmp.ne.s32.totalorder %s46, %s47
      %p61 = scmp.eq.s32.totalorder %s25, 1
      %p62 = por %p60, %p61
      %p64 = scmp.ne.s32.totalorder %s47, %s63
      %p65 = scmp.eq.s32.totalorder %s25, 0
      %p66 = por %p64, %p65
      %s67 = ssub.s32 %s26, %s38
      %p68 = scmp.eq.s32.totalorder %s67, 0
      %s70 = sadd.s32 %s69, 1
      %s71 = scalar_select %p68, %s69, %s70
      %p74 = pneg %p68
      %p75 = scmp.eq.s32.totalorder %s19, 1
      %p76 = por %p74, %p75
      %p77 = scmp.ne.s32.totalorder %s69, %s72
      %p78 = scmp.eq.s32.totalorder %s19, 0
      %p79 = por %p77, %p78
      %p80 = scmp.ne.s32.totalorder %s69, %s72
      %p81 = scmp.eq.s32.totalorder %s24, 1
      %p82 = por %p80, %p81
      %p83 = scmp.ne.s32.totalorder %s72, %s73
      %p84 = scmp.eq.s32.totalorder %s24, 0
      %p85 = por %p83, %p84
      %p86 = scmp.ne.s32.totalorder %s72, %s73
      %p87 = scmp.eq.s32.totalorder %s25, 1
      %p88 = por %p86, %p87
      %p90 = scmp.ne.s32.totalorder %s73, %s89
      %p91 = scmp.eq.s32.totalorder %s25, 0
      %p92 = por %p90, %p91
      %s94 = sadd.s32 %s93, 1
      %p97 = scmp.eq.s32.totalorder %s19, 1
      %p98 = scmp.ne.s32.totalorder %s93, %s95
      %p99 = scmp.eq.s32.totalorder %s19, 0
      %p100 = por %p98, %p99
      %p101 = scmp.ne.s32.totalorder %s93, %s95
      %p102 = scmp.eq.s32.totalorder %s24, 1
      %p103 = por %p101, %p102
      %p104 = scmp.ne.s32.totalorder %s95, %s96
      %p105 = scmp.eq.s32.totalorder %s24, 0
      %p106 = por %p104, %p105
      %p107 = scmp.ne.s32.totalorder %s95, %s96
      %p108 = scmp.eq.s32.totalorder %s25, 1
      %p109 = por %p107, %p108
      %p111 = scmp.ne.s32.totalorder %s96, %s110
      %p112 = scmp.eq.s32.totalorder %s25, 0
      %p113 = por %p111, %p112
      %s114 = ssub.s32 %s26, %s38
      %p115 = scmp.eq.s32.totalorder %s114, 0
      %s117 = sadd.s32 %s116, 1
      %s118 = scalar_select %p115, %s116, %s117
      %p121 = pneg %p115
      %p122 = scmp.eq.s32.totalorder %s19, 1
      %p123 = por %p121, %p122
      %p124 = scmp.ne.s32.totalorder %s116, %s119
      %p125 = scmp.eq.s32.totalorder %s19, 0
      %p126 = por %p124, %p125
      %p127 = scmp.ne.s32.totalorder %s116, %s119
      %p128 = scmp.eq.s32.totalorder %s24, 1
      %p129 = por %p127, %p128
      %p130 = scmp.ne.s32.totalorder %s119, %s120
      %p131 = scmp.eq.s32.totalorder %s24, 0
      %p132 = por %p130, %p131
      %p133 = scmp.ne.s32.totalorder %s119, %s120
      %p134 = scmp.eq.s32.totalorder %s25, 1
      %p135 = por %p133, %p134
      %p137 = scmp.ne.s32.totalorder %s120, %s136
      %p138 = scmp.eq.s32.totalorder %s25, 0
      %p139 = por %p137, %p138
      %s140 = ssub.s32 %s26, %s38
      %s141 = ssub.s32 %s27, %s34
      %s142 = sor.u32 %s140, %s141
      %p143 = scmp.eq.s32.totalorder %s142, 0
      %s145 = sadd.s32 %s144, 1
      %s146 = scalar_select %p143, %s144, %s145
      %p149 = pneg %p143
      %p150 = scmp.eq.s32.totalorder %s19, 1
      %p151 = por %p149, %p150
      %p152 = scmp.ne.s32.totalorder %s144, %s147
      %p153 = scmp.eq.s32.totalorder %s19, 0
      %p154 = por %p152, %p153
      %p155 = scmp.ne.s32.totalorder %s144, %s147
      %p156 = scmp.eq.s32.totalorder %s24, 1
      %p157 = por %p155, %p156
      %p158 = scmp.ne.s32.totalorder %s147, %s148
      %p159 = scmp.eq.s32.totalorder %s24, 0
      %p160 = por %p158, %p159
      %p161 = scmp.ne.s32.totalorder %s147, %s148
      %p162 = scmp.eq.s32.totalorder %s25, 1
      %p163 = por %p161, %p162
      %p165 = scmp.ne.s32.totalorder %s148, %s164
      %p166 = scmp.eq.s32.totalorder %s25, 0
      %p167 = por %p165, %p166
      %p168 = scmp.le.s32.totalorder 1, %s19
      %p169 = scmp.lt.s32.totalorder %s19, 3
      %p170 = pnand %p168, %p169
      %p171 = pneg %p170
      // Predicated region
      $region9: #{tpu_custom_call.1} parent=5 // pred_check
        _
      $region10: #{tpu_custom_call.1} parent=5 // pred_check_branch
        %173 = sbr.rel (%p170) target = $region12
      $region11: #{tpu_custom_call.1} parent=5 // pred_region
        %s174 = ssub.s32 %s19, 1
        // Predicated region
        $region13: #{tpu_custom_call.1} parent=11 // pred_check
          %p175 = pneg %p106
        $region14: #{tpu_custom_call.1} parent=11 // pred_check_branch
          %177 = sbr.rel (%p175) target = $region16
        $region15: #{tpu_custom_call.1} parent=11 // pred_region
          %s179 = ssub.s32 512, 512
          %180 = vsyncadd [#allocation6], %s179
          %s181 = sshll.u32 [#allocation7], 4
          %s182 = int_to_ptr.vmem [resolvable:$true] %s181
          %187 = dma.hbm_to_vmem [thread:$0]  %s2, 512, %s182, [#allocation6], 128, 128, 8
        $region16: #{tpu_custom_call.1} parent=11 // pred_fallthru
          _
      $region12: #{tpu_custom_call.1} parent=5 // pred_fallthru
        _
      %p188 = scmp.lt.s32.totalorder %s19, 2
      // Predicated region
      $region17: #{tpu_custom_call.1} parent=5 // pred_check
        %p189 = pneg %p188
      $region18: #{tpu_custom_call.1} parent=5 // pred_check_branch
        %191 = sbr.rel (%p189) target = $region20
      $region19: #{tpu_custom_call.1} parent=5 // pred_region
        // Predicated region
        $region21: #{tpu_custom_call.1} parent=19 // pred_check
          %p192 = pneg %p53
        $region22: #{tpu_custom_call.1} parent=19 // pred_check_branch
          %194 = sbr.rel (%p192) target = $region24
        $region23: #{tpu_custom_call.1} parent=19 // pred_region
          %s195 = sand.u32 %s43, 1
          %s196 = scalar_lea.sflag [#allocation3], %s195
          %s197 = sand.u32 %s43, 1
          %s198 = smul.addr %s197, 8
          %s199 = scalar_lea.vmem [#allocation2], %s198
          %s201 = ssub.s32 128, 128
          %202 = vsyncadd %s196, %s201
          %s203 = sadd.s32 %s27, %s26
          %s204 = smul.addr %s203, 128
          %s205 = scalar_lea.hbm %s0, %s204
          %s207 = sshll.u32 %s199, 4
          %s208 = int_to_ptr.vmem [resolvable:$true] %s207
          %210 = dma.hbm_to_vmem [thread:$0]  %s205, 128, %s208, %s196
        $region24: #{tpu_custom_call.1} parent=19 // pred_fallthru
          _
        // Predicated region
        $region25: #{tpu_custom_call.1} parent=19 // pred_check
          %p211 = pneg %p79
        $region26: #{tpu_custom_call.1} parent=19 // pred_check_branch
          %213 = sbr.rel (%p211) target = $region28
        $region27: #{tpu_custom_call.1} parent=19 // pred_region
          %s214 = sand.u32 %s19, 1
          %s215 = scalar_lea.sflag [#allocation6], %s214
          %s216 = sand.u32 %s69, 1
          %s217 = smul.addr %s216, 8
          %s218 = scalar_lea.vmem [#allocation5], %s217
          %s220 = ssub.s32 128, 128
          %221 = vsyncadd %s215, %s220
          %s222 = smul.addr %s26, 128
          %s223 = scalar_lea.hbm %s1, %s222
          %s225 = sshll.u32 %s218, 4
          %s226 = int_to_ptr.vmem [resolvable:$true] %s225
          %228 = dma.hbm_to_vmem [thread:$0]  %s223, 128, %s226, %s215
        $region28: #{tpu_custom_call.1} parent=19 // pred_fallthru
          _
        // Predicated region
        $region29: #{tpu_custom_call.1} parent=19 // pred_check
          %p229 = pneg %p126
        $region30: #{tpu_custom_call.1} parent=19 // pred_check_branch
          %231 = sbr.rel (%p229) target = $region32
        $region31: #{tpu_custom_call.1} parent=19 // pred_region
          %p232 = scmp.lt.s32.totalorder %s26, 1
          %s233 = scalar_select %p232, %s26, 1
          %s234 = scalar_lea.vmem %s3, %s233
        $region32: #{tpu_custom_call.1} parent=19 // pred_fallthru
          _
      $region20: #{tpu_custom_call.1} parent=5 // pred_fallthru
        _
      %p235 = scmp.le.s32.totalorder 1, %s19
      %p236 = scmp.lt.s32.totalorder %s19, 3
      %p237 = pnand %p235, %p236
      %p238 = pneg %p237
      // Predicated region
      $region33: #{tpu_custom_call.1} parent=5 // pred_check
        _
      $region34: #{tpu_custom_call.1} parent=5 // pred_check_branch
        %240 = sbr.rel (%p237) target = $region36
      $region35: #{tpu_custom_call.1} parent=5 // pred_region
        %s241 = ssub.s32 %s19, 1
        %s242 = sand.u32 %s46, 1
        %s243 = scalar_lea.sflag [#allocation3], %s242
        %s244 = sand.u32 %s46, 1
        %s245 = smul.addr %s244, 8
        %s246 = scalar_lea.vmem [#allocation2], %s245
        // Predicated region
        $region37: #{tpu_custom_call.1} parent=35 // pred_check
          %p247 = pneg %p59
        $region38: #{tpu_custom_call.1} parent=35 // pred_check_branch
          %249 = sbr.rel (%p247) target = $region40
        $region39: #{tpu_custom_call.1} parent=35 // pred_region
          %250 = dma.done %s243, 128
        $region40: #{tpu_custom_call.1} parent=35 // pred_fallthru
          _
        %s251 = sand.u32 %s24, 1
        %s252 = scalar_lea.sflag [#allocation6], %s251
        %s253 = sand.u32 %s72, 1
        %s254 = smul.addr %s253, 8
        %s255 = scalar_lea.vmem [#allocation5], %s254
        // Predicated region
        $region41: #{tpu_custom_call.1} parent=35 // pred_check
          %p256 = pneg %p85
        $region42: #{tpu_custom_call.1} parent=35 // pred_check_branch
          %258 = sbr.rel (%p256) target = $region44
        $region43: #{tpu_custom_call.1} parent=35 // pred_region
          %259 = dma.done %s252, 128
        $region44: #{tpu_custom_call.1} parent=35 // pred_fallthru
          _
        // Predicated region
        $region45: #{tpu_custom_call.1} parent=35 // pred_check
          %p260 = pneg %p106
        $region46: #{tpu_custom_call.1} parent=35 // pred_check_branch
          %262 = sbr.rel (%p260) target = $region48
        $region47: #{tpu_custom_call.1} parent=35 // pred_region
          %263 = dma.done [#allocation6], 512
        $region48: #{tpu_custom_call.1} parent=35 // pred_fallthru
          _
        %s264 = sand.u32 %s46, 1
        %s265 = scalar_lea.sflag [#allocation3], %s264
        %s266 = sand.u32 %s46, 1
        %s267 = smul.addr %s266, 8
        %s268 = scalar_lea.vmem [#allocation2], %s267
        %p269 = pneg %p59
        %p270 = pneg %p56
        %s271 = sand.u32 %s24, 1
        %s272 = scalar_lea.sflag [#allocation6], %s271
        %s273 = sand.u32 %s72, 1
        %s274 = smul.addr %s273, 8
        %s275 = scalar_lea.vmem [#allocation5], %s274
        %p276 = pneg %p85
        %p277 = pneg %p82
        %p278 = pneg %p106
        %p279 = pneg %p103
        %p280 = scmp.lt.s32.totalorder %s28, 1
        %s281 = scalar_select %p280, %s28, 1
        %s282 = scalar_lea.vmem %s3, %s281
        %p283 = pneg %p132
        %p284 = pneg %p129
        %p285 = pneg %p160
        %p286 = pneg %p157
        %s287 = sand.u32 %s147, 1
        %s288 = scalar_lea.sflag [#allocation4], %s287
        %s289 = sand.u32 %s147, 1
        %s290 = smul.addr %s289, 8
        %s291 = scalar_lea.vmem [#allocation8], %s290
        %p292 = scmp.lt.s32.totalorder %s28, 1
        %s293 = scalar_select %p292, %s28, 1
        %s294 = scalar_lea.vmem %s3, %s293
        %v295 = vld [vmem:[%s294] sm:$0x1]
        %vm296 = vcmp.ne.s32.totalorder %v295, 0
        %v297 = vld [vmem:[%s246] sm:$0xff]
        %v298 = vld [vmem:[%s255] sm:$0xff]
        %v299 = vld [vmem:[#allocation7] sm:$0xff]
        %v300 = vld [vmem:[#allocation7 + $0x8] sm:$0xff]
        %v301 = vld [vmem:[#allocation7 + $0x10] sm:$0xff]
        %v302 = vld [vmem:[#allocation7 + $0x18] sm:$0xff]
        %vm303 = vcmask 261120
        %v305 = vsel %vm303, %v297, 0
        %307 = vmatprep.subr.mxu0 0.0
        %308 = vmatpush1.msra.mxu0 %v299
        %309 = vmatprep.subr.mxu0 0.0
        %310 = vmatpush1.msra.mxu0 %v300
        %311 = vmatprep.subr.mxu0 0.0
        %312 = vmatpush1.msra.mxu0 %v301
        %313 = vmatprep.subr.mxu0 0.0
        %314 = vmatpush1.msra.mxu0 %v302
        %315 = vmatprep.subr.mxu0 0.0
        %316 = vmatpush1.msra.mxu0 0.0
        %317 = vmatprep.subr.mxu0 0.0
        %318 = vmatpush1.msra.mxu0 0.0
        %319 = vmatprep.subr.mxu0 0.0
        %320 = vmatpush1.msra.mxu0 0.0
        %321 = vmatprep.subr.mxu0 0.0
        %322 = vmatpush1.msra.mxu0 0.0
        %323 = vmatprep.subr.mxu0 0.0
        %324 = vmatpush1.msra.mxu0 0.0
        %325 = vmatprep.subr.mxu0 0.0
        %326 = vmatpush1.msra.mxu0 0.0
        %327 = vmatprep.subr.mxu0 0.0
        %328 = vmatpush1.msra.mxu0 0.0
        %329 = vmatprep.subr.mxu0 0.0
        %330 = vmatpush1.msra.mxu0 0.0
        %331 = vmatprep.subr.mxu0 0.0
        %332 = vmatpush1.msra.mxu0 0.0
        %333 = vmatprep.subr.mxu0 0.0
        %334 = vmatpush1.msra.mxu0 0.0
        %335 = vmatprep.subr.mxu0 0.0
        %336 = vmatpush1.msra.mxu0 0.0
        %337 = vmatprep.subr.mxu0 0.0
        %338 = vmatpush1.msra.mxu0 0.0
        %339 = vmatprep.subr.mxu0 0.0
        %340 = vmatpush1.msra.mxu0 0.0
        %341 = vmatprep.subr.mxu0 0.0
        %342 = vmatpush1.msra.mxu0 0.0
        %343 = vmatprep.subr.mxu0 0.0
        %344 = vmatpush1.msra.mxu0 0.0
        %345 = vmatprep.subr.mxu0 0.0
        %346 = vmatpush1.msra.mxu0 0.0
        %347 = vmatprep.subr.mxu0 0.0
        %348 = vmatpush1.msra.mxu0 0.0
        %349 = vmatprep.subr.mxu0 0.0
        %350 = vmatpush1.msra.mxu0 0.0
        %351 = vmatprep.subr.mxu0 0.0
        %352 = vmatpush1.msra.mxu0 0.0
        %353 = vmatprep.subr.mxu0 0.0
        %354 = vmatpush1.msra.mxu0 0.0
        %355 = vmatprep.subr.mxu0 0.0
        %356 = vmatpush1.msra.mxu0 0.0
        %357 = vmatprep.subr.mxu0 0.0
        %358 = vmatpush1.msra.mxu0 0.0
        %359 = vmatprep.subr.mxu0 0.0
        %360 = vmatpush1.msra.mxu0 0.0
        %361 = vmatprep.subr.mxu0 0.0
        %362 = vmatpush1.msra.mxu0 0.0
        %363 = vmatprep.subr.mxu0 0.0
        %364 = vmatpush1.msra.mxu0 0.0
        %365 = vmatprep.subr.mxu0 0.0
        %366 = vmatpush1.msra.mxu0 0.0
        %367 = vmatprep.subr.mxu0 0.0
        %368 = vmatpush1.msra.mxu0 0.0
        %369 = vmatprep.subr.mxu0 0.0
        %370 = vmatpush1.msra.mxu0 0.0
        %371 = vmatprep.mubr.f32.mxu0 0.0
        %372 = vmatmul.mubr.f32.gmra.mrb[0].mxu0 %v305
        %v373 = vpop.f32.mrb[0].mxu0
        %v374 = vadd.f32 0.0, %v373
        %v375 = vpop.f32.mrb[0].mxu0
        %376 = vdwg.mxu0
        %v378 = vsel %vm303, %v374, 0
        %v381 = vsel %vm303, %v298, 0
        %383 = vmatprep.subr.mxu0 0.0
        %384 = vmatpush1.xpose.msra.mxu0 %v381
        %385 = vmatprep.subr.mxu0 0.0
        %386 = vmatpush1.xpose.msra.mxu0 0.0
        %387 = vmatprep.subr.mxu0 0.0
        %388 = vmatpush1.xpose.msra.mxu0 0.0
        %389 = vmatprep.subr.mxu0 0.0
        %390 = vmatpush1.xpose.msra.mxu0 0.0
        %391 = vmatprep.subr.mxu0 0.0
        %392 = vmatpush1.xpose.msra.mxu0 0.0
        %393 = vmatprep.subr.mxu0 0.0
        %394 = vmatpush1.xpose.msra.mxu0 0.0
        %395 = vmatprep.subr.mxu0 0.0
        %396 = vmatpush1.xpose.msra.mxu0 0.0
        %397 = vmatprep.subr.mxu0 0.0
        %398 = vmatpush1.xpose.msra.mxu0 0.0
        %399 = vmatprep.subr.mxu0 0.0
        %400 = vmatpush1.xpose.msra.mxu0 0.0
        %401 = vmatprep.subr.mxu0 0.0
        %402 = vmatpush1.xpose.msra.mxu0 0.0
        %403 = vmatprep.subr.mxu0 0.0
        %404 = vmatpush1.xpose.msra.mxu0 0.0
        %405 = vmatprep.subr.mxu0 0.0
        %406 = vmatpush1.xpose.msra.mxu0 0.0
        %407 = vmatprep.subr.mxu0 0.0
        %408 = vmatpush1.xpose.msra.mxu0 0.0
        %409 = vmatprep.subr.mxu0 0.0
        %410 = vmatpush1.xpose.msra.mxu0 0.0
        %411 = vmatprep.subr.mxu0 0.0
        %412 = vmatpush1.xpose.msra.mxu0 0.0
        %413 = vmatprep.subr.mxu0 0.0
        %414 = vmatpush1.xpose.msra.mxu0 0.0
        %415 = vmatprep.subr.mxu0 0.0
        %416 = vmatpush1.xpose.msra.mxu0 0.0
        %417 = vmatprep.subr.mxu0 0.0
        %418 = vmatpush1.xpose.msra.mxu0 0.0
        %419 = vmatprep.subr.mxu0 0.0
        %420 = vmatpush1.xpose.msra.mxu0 0.0
        %421 = vmatprep.subr.mxu0 0.0
        %422 = vmatpush1.xpose.msra.mxu0 0.0
        %423 = vmatprep.subr.mxu0 0.0
        %424 = vmatpush1.xpose.msra.mxu0 0.0
        %425 = vmatprep.subr.mxu0 0.0
        %426 = vmatpush1.xpose.msra.mxu0 0.0
        %427 = vmatprep.subr.mxu0 0.0
        %428 = vmatpush1.xpose.msra.mxu0 0.0
        %429 = vmatprep.subr.mxu0 0.0
        %430 = vmatpush1.xpose.msra.mxu0 0.0
        %431 = vmatprep.subr.mxu0 0.0
        %432 = vmatpush1.xpose.msra.mxu0 0.0
        %433 = vmatprep.subr.mxu0 0.0
        %434 = vmatpush1.xpose.msra.mxu0 0.0
        %435 = vmatprep.subr.mxu0 0.0
        %436 = vmatpush1.xpose.msra.mxu0 0.0
        %437 = vmatprep.subr.mxu0 0.0
        %438 = vmatpush1.xpose.msra.mxu0 0.0
        %439 = vmatprep.subr.mxu0 0.0
        %440 = vmatpush1.xpose.msra.mxu0 0.0
        %441 = vmatprep.subr.mxu0 0.0
        %442 = vmatpush1.xpose.msra.mxu0 0.0
        %443 = vmatprep.subr.mxu0 0.0
        %444 = vmatpush1.xpose.msra.mxu0 0.0
        %445 = vmatprep.subr.mxu0 0.0
        %446 = vmatpush1.xpose.msra.mxu0 0.0
        %447 = vmatprep.mubr.f32.mxu0 0.0
        %448 = vmatmul.mubr.f32.gmra.mrb[0].mxu0 %v378
        %v449 = vpop.f32.mrb[0].mxu0
        %v450 = vadd.f32 0.0, %v449
        %v451 = vpop.f32.mrb[0].mxu0
        %452 = vdwg.mxu0
        %v453 = vsel %vm296, 1, 0
        %v454 = vlaneseq
        %v455 = vshrl.u32 %v454, 7
        %v456 = vsub.s32 0, %v455
        %v457 = vrot.slane %v453, %v456
        %vm458 = vcmp.eq.s32.totalorder %v457, 1
        %v459 = vsel %vm458, -1e+09, %v450
        %vm460 = vcmask 64512
        %v461 = vsel %vm460, %v459, -inf
        %462 = vmax.xlane.f32.xlu0 %v461
        %v463 = vpop.xlane.xlu0 %462
        %v464 = vsub.f32 %v459, %v463
        %v465 = vmul.f32 %v464, 1.442695
        %v466 = vpow.pop %v465
        %v467 = vsel %vm460, %v466, 0.0
        %468 = vadd.xlane.f32.xlu0 %v467
        %v469 = vpop.xlane.xlu0 %468
        %v470 = vrcp.pop %v469
        %v471 = vmul.f32 %v466, %v470
        %472 = vst.msk [vmem:[%s291] sm:$0xff] %vm460, %v471
        %s473 = sand.u32 %s147, 1
        %s474 = scalar_lea.sflag [#allocation4], %s473
        %s475 = sand.u32 %s147, 1
        %s476 = smul.addr %s475, 8
        %s477 = scalar_lea.vmem [#allocation8], %s476
        // Predicated region
        $region49: #{tpu_custom_call.1} parent=35 // pred_check
          %p478 = pneg %p157
        $region50: #{tpu_custom_call.1} parent=35 // pred_check_branch
          %480 = sbr.rel (%p478) target = $region52
        $region51: #{tpu_custom_call.1} parent=35 // pred_region
          %s482 = ssub.s32 128, 128
          %483 = vsyncadd %s474, %s482
          %s484 = sadd.s32 %s29, %s28
          %s485 = smul.addr %s484, 128
          %s486 = scalar_lea.hbm %s4, %s485
          %s488 = sshll.u32 %s477, 4
          %s489 = int_to_ptr.vmem [resolvable:$true] %s488
          %491 = dma.vmem_to_hbm [thread:$0]  %s489, 128, %s486, %s474
        $region52: #{tpu_custom_call.1} parent=35 // pred_fallthru
          _
      $region36: #{tpu_custom_call.1} parent=5 // pred_fallthru
        _
      %p492 = scmp.le.s32.totalorder 2, %s19
      // Predicated region
      $region53: #{tpu_custom_call.1} parent=5 // pred_check
        %p493 = pneg %p492
      $region54: #{tpu_custom_call.1} parent=5 // pred_check_branch
        %495 = sbr.rel (%p493) target = $region56
      $region55: #{tpu_custom_call.1} parent=5 // pred_region
        %s496 = ssub.s32 %s19, 2
        // Predicated region
        $region57: #{tpu_custom_call.1} parent=55 // pred_check
          %p497 = pneg %p163
        $region58: #{tpu_custom_call.1} parent=55 // pred_check_branch
          %499 = sbr.rel (%p497) target = $region60
        $region59: #{tpu_custom_call.1} parent=55 // pred_region
          %s500 = sand.u32 %s148, 1
          %s501 = scalar_lea.sflag [#allocation4], %s500
          %s502 = sand.u32 %s148, 1
          %s503 = smul.addr %s502, 8
          %s504 = scalar_lea.vmem [#allocation8], %s503
          %505 = dma.done %s501, 128
        $region60: #{tpu_custom_call.1} parent=55 // pred_fallthru
          _
      $region56: #{tpu_custom_call.1} parent=5 // pred_fallthru
        _
    $region6: #{tpu_custom_call.1} parent=1 // loop_footer
      %s23 = sadd.s32 1, %s19
    $region7: #{tpu_custom_call.1} parent=1 // loop_footer_branch
      %18 = sbr.rel target = $region3
    $region8: #{tpu_custom_call.1} parent=1 // loop_exit
      _
    %506 = vsyncpa [#allocation3], 1
    %s507 = scalar_lea.sflag [#allocation3], 1
    %508 = vsyncpa %s507, 1
    %509 = vsyncpa [#allocation6], 1
    %s510 = scalar_lea.sflag [#allocation6], 1
    %511 = vsyncpa %s510, 1
    %512 = vsyncpa [#allocation4], 1
    %s513 = scalar_lea.sflag [#allocation4], 1
    %514 = vsyncpa %s513, 1

</llo_original>
